<compile_context>
chip_gen: v7x
topology: tpu7x:2x2x1
jax: 0.10.0
libtpu: 0.0.40
codegen_flags: <defaults>
</compile_context>

<pallas_src>
import jax
import jax.numpy as jnp
from jax.experimental import pallas as pl
from jax.experimental.pallas import tpu as pltpu


def _round_up(x, m):
    return ((x + m - 1) // m) * m


def _glove_kernel(emb_i_ref, emb_j_ref,        # (E, TB) transposed embedding rows
                  bias_i_ref, bias_j_ref,      # (1, TB) gathered biases
                  counts_ref, weights_ref,     # (1, TB) per-pair scalars
                  loss_ref):                   # (1, TB) output
    # dot_product = sum_e(embedding_i * embedding_j): sublane reduction ->
    # full-width VPU multiplies/adds, only a few sublane folds on the XLU.
    dot = jnp.sum(emb_i_ref[...] * emb_j_ref[...], axis=0, keepdims=True)   # (1, TB)
    # loss = weights * (dot + bias_i + bias_j - log(counts)) ** 2   (log -> EUP)
    err = dot + bias_i_ref[...] + bias_j_ref[...] - jnp.log(counts_ref[...])
    loss_ref[...] = weights_ref[...] * err * err


def glove_forward(params, i_indices, j_indices, counts, weights, *,
                  block_b=2048, vmem_budget_bytes=16 * 1024 * 1024):
    """Pallas equivalent of Glove.forward (no-regularization path)."""
    emb_v, emb_u, bias_v, bias_u = params          # (V,E) (V,E) (V,1) (V,1)
    V, E = emb_v.shape
    B = i_indices.shape[0]

    i_idx = i_indices.astype(jnp.int32)
    j_idx = j_indices.astype(jnp.int32)
    counts_f = counts.astype(jnp.float32)
    weights_f = weights.astype(jnp.float32)

    # --- batch tile (lanes) --------------------------------------------------
    # Blocks are (E, TB) / (1, TB); TB sits on the lane axis -> multiple of 128.
    # Per-step VMEM is dominated by the two double-buffered embedding streams:
    # 2 streams * 2 buffers * TB * E * 4 B.  Cap at ~16 MiB so the tile fits the
    # scoped-VMEM default on every generation (incl. v7x's 64 MiB physical VMEM).
    max_tb = max(128, (vmem_budget_bytes // (2 * 2 * E * 4)) // 128 * 128)
    tb = min(block_b, max_tb, _round_up(B, 128))
    tb = max(128, (tb // 128) * 128)
    bp = _round_up(B, tb)

    # --- pad the CHEAP arrays (indices + per-pair scalars) before the gather --
    pad = bp - B
    if pad:
        i_idx = jnp.pad(i_idx, (0, pad))                              # index 0 is valid
        j_idx = jnp.pad(j_idx, (0, pad))
        counts_f = jnp.pad(counts_f, (0, pad), constant_values=1.0)   # log(1) = 0
        weights_f = jnp.pad(weights_f, (0, pad))                      # weight 0 -> loss 0

    # --- one batched gather per table, emitted transposed (batch on lanes) ----
    e_i_t = jnp.take(emb_v, i_idx, axis=0).astype(jnp.float32).T      # (E, bp)
    e_j_t = jnp.take(emb_u, j_idx, axis=0).astype(jnp.float32).T      # (E, bp)
    b_i = jnp.take(bias_v[:, 0], i_idx, axis=0).astype(jnp.float32).reshape(1, bp)
    b_j = jnp.take(bias_u[:, 0], j_idx, axis=0).astype(jnp.float32).reshape(1, bp)
    counts_2d = counts_f.reshape(1, bp)
    weights_2d = weights_f.reshape(1, bp)

    emb_spec = pl.BlockSpec((E, tb), lambda b: (0, b))
    sc_spec = pl.BlockSpec((1, tb), lambda b: (0, b))

    loss_2d = pl.pallas_call(
        _glove_kernel,
        out_shape=jax.ShapeDtypeStruct((1, bp), jnp.float32),
        grid_spec=pl.GridSpec(
            grid=(bp // tb,),
            in_specs=[emb_spec, emb_spec, sc_spec, sc_spec, sc_spec, sc_spec],
            out_specs=sc_spec,
        ),
        compiler_params=pltpu.CompilerParams(
            dimension_semantics=("parallel",)),
    )(e_i_t, e_j_t, b_i, b_j, counts_2d, weights_2d)

    loss = loss_2d[0, :B]
    # regularization is False for default construction -> (loss, zeros_like(loss))
    return loss, jnp.zeros_like(loss)


def init_glove_params(key, num_words, embedding_size):
    """Deterministic parameter init mirroring Glove.__init__ (no embeddings_init)."""
    kv, ku = jax.random.split(key)
    emb_v = jax.random.uniform(kv, (num_words, embedding_size),
                               minval=-0.5, maxval=0.5, dtype=jnp.float32)
    emb_u = jax.random.uniform(ku, (num_words, embedding_size),
                               minval=-0.5, maxval=0.5, dtype=jnp.float32)
    bias_v = jnp.zeros((num_words, 1), dtype=jnp.float32)
    bias_u = jnp.zeros((num_words, 1), dtype=jnp.float32)
    return emb_v, emb_u, bias_v, bias_u


def _reference_forward(params, i_indices, j_indices, counts, weights):
    emb_v, emb_u, bias_v, bias_u = params
    e_i = emb_v[i_indices]
    e_j = emb_u[j_indices]
    b_i = bias_v[i_indices, 0]
    b_j = bias_u[j_indices, 0]
    dot = jnp.sum(e_i * e_j, axis=1)
    return weights * (dot + b_i + b_j - jnp.log(counts)) ** 2


if __name__ == "__main__":
    num_words = 64
    embedding_size = 128
    batch = 300          # not a multiple of the 128-lane tile -> exercises padding path

    key = jax.random.PRNGKey(0)
    k_param, k_i, k_j, k_c, k_w = jax.random.split(key, 5)

    params = init_glove_params(k_param, num_words, embedding_size)

    i_indices = jax.random.randint(k_i, (batch,), 0, num_words, dtype=jnp.int32)
    j_indices = jax.random.randint(k_j, (batch,), 0, num_words, dtype=jnp.int32)
    counts = jax.random.uniform(k_c, (batch,), minval=1.0, maxval=50.0,
                                dtype=jnp.float32)
    weights = jax.random.uniform(k_w, (batch,), minval=0.1, maxval=1.0,
                                 dtype=jnp.float32)

    # small tile so the grid has multiple steps even at this tiny batch
    loss, reg_loss = glove_forward(params, i_indices, j_indices, counts, weights,
                                   block_b=128)
    loss = jax.block_until_ready(loss)
    reg_loss = jax.block_until_ready(reg_loss)

    ref = _reference_forward(params, i_indices, j_indices, counts, weights)
    assert loss.shape == (batch,) and reg_loss.shape == (batch,)
    assert jnp.allclose(loss, ref, atol=1e-5, rtol=1e-5), (loss, ref)
    assert jnp.all(reg_loss == 0.0)

    print("KERNEL_OK")
</pallas_src>

<mosaic_0001>
module attributes {stable_mosaic.version = 11 : i64} {
  func.func @_glove_kernel(%arg0: i32, %arg1: memref<128x128xf32, #tpu.memory_space<vmem>>, %arg2: memref<128x128xf32, #tpu.memory_space<vmem>>, %arg3: memref<1x128xf32, #tpu.memory_space<vmem>>, %arg4: memref<1x128xf32, #tpu.memory_space<vmem>>, %arg5: memref<1x128xf32, #tpu.memory_space<vmem>>, %arg6: memref<1x128xf32, #tpu.memory_space<vmem>>, %arg7: memref<1x128xf32, #tpu.memory_space<vmem>>) attributes {dimension_semantics = [#tpu.dimension_semantics<parallel>], iteration_bounds = array<i64: 3>, scalar_prefetch = 0 : i64, scratch_operands = 0 : i64, tpu.core_type = #tpu.core_type<tc>, window_params = [{transform_indices = @transform_0, window_bounds = array<i64: 128, 128>}, {transform_indices = @transform_1, window_bounds = array<i64: 128, 128>}, {transform_indices = @transform_2, window_bounds = array<i64: 1, 128>}, {transform_indices = @transform_3, window_bounds = array<i64: 1, 128>}, {transform_indices = @transform_4, window_bounds = array<i64: 1, 128>}, {transform_indices = @transform_5, window_bounds = array<i64: 1, 128>}, {transform_indices = @transform_6, window_bounds = array<i64: 1, 128>}]} {
    %c0 = arith.constant 0 : index
    %c0_0 = arith.constant 0 : index
    %0 = vector.load %arg1[%c0, %c0_0] : memref<128x128xf32, #tpu.memory_space<vmem>>, vector<128x128xf32>
    %c0_1 = arith.constant 0 : index
    %c0_2 = arith.constant 0 : index
    %1 = vector.load %arg2[%c0_1, %c0_2] : memref<128x128xf32, #tpu.memory_space<vmem>>, vector<128x128xf32>
    %2 = arith.mulf %0, %1 : vector<128x128xf32>
    %cst = arith.constant dense<0.000000e+00> : vector<128xf32>
    %3 = vector.multi_reduction <add>, %2, %cst [0] : vector<128x128xf32> to vector<128xf32>
    %4 = vector.shape_cast %3 : vector<128xf32> to vector<1x128xf32>
    %c0_3 = arith.constant 0 : index
    %c0_4 = arith.constant 0 : index
    %5 = vector.load %arg3[%c0_3, %c0_4] : memref<1x128xf32, #tpu.memory_space<vmem>>, vector<1x128xf32>
    %6 = arith.addf %4, %5 : vector<1x128xf32>
    %c0_5 = arith.constant 0 : index
    %c0_6 = arith.constant 0 : index
    %7 = vector.load %arg4[%c0_5, %c0_6] : memref<1x128xf32, #tpu.memory_space<vmem>>, vector<1x128xf32>
    %8 = arith.addf %6, %7 : vector<1x128xf32>
    %c0_7 = arith.constant 0 : index
    %c0_8 = arith.constant 0 : index
    %9 = vector.load %arg5[%c0_7, %c0_8] : memref<1x128xf32, #tpu.memory_space<vmem>>, vector<1x128xf32>
    %10 = math.log %9 : vector<1x128xf32>
    %11 = arith.subf %8, %10 : vector<1x128xf32>
    %c0_9 = arith.constant 0 : index
    %c0_10 = arith.constant 0 : index
    %12 = vector.load %arg6[%c0_9, %c0_10] : memref<1x128xf32, #tpu.memory_space<vmem>>, vector<1x128xf32>
    %13 = arith.mulf %12, %11 : vector<1x128xf32>
    %14 = arith.mulf %13, %11 : vector<1x128xf32>
    %c0_11 = arith.constant 0 : index
    %c0_12 = arith.constant 0 : index
    %15 = vector.load %arg7[%c0_11, %c0_12] : memref<1x128xf32, #tpu.memory_space<vmem>>, vector<1x128xf32>
    tpu.vector_store %arg7[%c0_11, %c0_12], %14 {strides = array<i32>} : memref<1x128xf32, #tpu.memory_space<vmem>>, vector<1x128xf32>,
    return
  }
  func.func @transform_0(%arg0: i32) -> (i32, i32) {
    %c0_i32 = arith.constant 0 : i32
    %c0_i32_0 = arith.constant 0 : i32
    return %c0_i32, %arg0 : i32, i32
  }
  func.func @transform_1(%arg0: i32) -> (i32, i32) {
    %c0_i32 = arith.constant 0 : i32
    %c0_i32_0 = arith.constant 0 : i32
    return %c0_i32, %arg0 : i32, i32
  }
  func.func @transform_2(%arg0: i32) -> (i32, i32) {
    %c0_i32 = arith.constant 0 : i32
    %c0_i32_0 = arith.constant 0 : i32
    return %c0_i32, %arg0 : i32, i32
  }
  func.func @transform_3(%arg0: i32) -> (i32, i32) {
    %c0_i32 = arith.constant 0 : i32
    %c0_i32_0 = arith.constant 0 : i32
    return %c0_i32, %arg0 : i32, i32
  }
  func.func @transform_4(%arg0: i32) -> (i32, i32) {
    %c0_i32 = arith.constant 0 : i32
    %c0_i32_0 = arith.constant 0 : i32
    return %c0_i32, %arg0 : i32, i32
  }
  func.func @transform_5(%arg0: i32) -> (i32, i32) {
    %c0_i32 = arith.constant 0 : i32
    %c0_i32_0 = arith.constant 0 : i32
    return %c0_i32, %arg0 : i32, i32
  }
  func.func @transform_6(%arg0: i32) -> (i32, i32) {
    %c0_i32 = arith.constant 0 : i32
    %c0_i32_0 = arith.constant 0 : i32
    return %c0_i32, %arg0 : i32, i32
  }
}

</mosaic_0001>

<llo_original>
// kernel: tpu_custom_call.1
$region0: #{tpu_custom_call.1}
  #allocation0 [shape = 'u32[]', space=smem, size = 0x4, offset = 0x4, fixed_abs, tag = 'smem constant byte address 0x4 - core index']
  #allocation1 [shape = 'u32[144,128]{1,0:T(1,128)}', space=vmem, size = 0x12000, scoped, tag = 'internal scratch']
  %s0 = inlined_call_operand.hbm [shape: f32[128,384], index: 0, kind: input, shape index: {}]
  %s1 = inlined_call_operand.hbm [shape: f32[128,384], index: 1, kind: input, shape index: {}]
  %s2 = inlined_call_operand.vmem [shape: f32[1,384], index: 2, kind: input, shape index: {}]
  %s3 = inlined_call_operand.vmem [shape: f32[1,384], index: 3, kind: input, shape index: {}]
  %s4 = inlined_call_operand.vmem [shape: f32[1,384], index: 4, kind: input, shape index: {}]
  %s5 = inlined_call_operand.vmem [shape: f32[1,384], index: 5, kind: input, shape index: {}]
  %s6 = inlined_call_operand.hbm [shape: f32[1,384], index: 6, kind: output, shape index: {}]
  %s7 = sld [smem:[#allocation0]]
  $region65: #{tpu_custom_call.1} parent=0
    _
  %s9 = ssub.s32 1, %s7
  %s10 = scalar_select 0, %s9, %s7
  $region1: #{tpu_custom_call.1} parent=0
    #allocation2 [shape = 'u8[131072]{0}', space=vmem, size = 0x20000, scoped, tag = 'input window, operand 0']
    #allocation3 [shape = 's32[2]{0}', space=sflag, size = 0x8, scoped, tag = 'scoped memory for tpu_custom_call.1']
    #allocation4 [shape = 's32[2]{0}', space=sflag, size = 0x8, scoped, tag = 'scoped memory for tpu_custom_call.1']
    #allocation5 [shape = 'u8[131072]{0}', space=vmem, size = 0x20000, scoped, tag = 'input window, operand 1']
    #allocation6 [shape = 's32[2]{0}', space=sflag, size = 0x8, scoped, tag = 'scoped memory for tpu_custom_call.1']
    #allocation7 [shape = 'u8[1024]{0}', space=vmem, size = 0x400, scoped, tag = 'output window, operand 0']
    %11 = vsyncpa [#allocation3], 0
    %s12 = scalar_lea.sflag [#allocation3], 1
    %13 = vsyncpa %s12, 0
    %14 = vsyncpa [#allocation6], 0
    %s15 = scalar_lea.sflag [#allocation6], 1
    %16 = vsyncpa %s15, 0
    %17 = vsyncpa [#allocation4], 0
    %s18 = scalar_lea.sflag [#allocation4], 1
    %19 = vsyncpa %s18, 0
    loop: start=0, step=1, limit=5
    $region2: #{tpu_custom_call.1} parent=1 // loop_pre_header
      _
    $region3: #{tpu_custom_call.1} parent=1 // loop_header
      %s21 = sphi 0, %s25
      %p22 = scmp.ge.s32.totalorder %s21, 5
      %s31 = sphi 0, %s33
      %s34 = sphi 0, %s31
      %s35 = sphi 0, %s34
      %s51 = sphi 0, %s35
      %s57 = sphi 0, %s59
      %s60 = sphi 0, %s57
      %s61 = sphi 0, %s60
      %s77 = sphi 0, %s61
      %s83 = sphi 0, %s85
      %s86 = sphi 0, %s83
      %s87 = sphi 0, %s86
      %s103 = sphi 0, %s87
      %s109 = sphi 0, %s111
      %s112 = sphi 0, %s109
      %s113 = sphi 0, %s112
      %s129 = sphi 0, %s113
      %s135 = sphi 0, %s137
      %s138 = sphi 0, %s135
      %s139 = sphi 0, %s138
      %s155 = sphi 0, %s139
      %s161 = sphi 0, %s163
      %s164 = sphi 0, %s161
      %s165 = sphi 0, %s164
      %s181 = sphi 0, %s165
      %s187 = sphi 0, %s189
      %s190 = sphi 0, %s187
      %s191 = sphi 0, %s190
      %s207 = sphi 0, %s191
    $region4: #{tpu_custom_call.1} parent=1 // loop_header_branch
      %24 = sbr.rel (%p22) target = $region8
    $region5: #{tpu_custom_call.1} parent=1 // loop_body
      %s26 = ssub.s32 %s21, 1
      %s27 = ssub.s32 %s21, 2
      %s28 = sadd.s32 %s21, 1
      %s29 = ssub.s32 %s21, %s28
      %p30 = scmp.eq.s32.totalorder %s29, 0
      %s32 = sadd.s32 %s31, 1
      %s33 = scalar_select %p30, %s31, %s32
      %p36 = pneg %p30
      %p37 = scmp.eq.s32.totalorder %s21, 2
      %p38 = por %p36, %p37
      %p39 = scmp.ne.s32.totalorder %s31, %s34
      %p40 = scmp.eq.s32.totalorder %s21, 0
      %p41 = por %p39, %p40
      %p42 = scmp.ne.s32.totalorder %s31, %s34
      %p43 = scmp.eq.s32.totalorder %s26, 2
      %p44 = por %p42, %p43
      %p45 = scmp.ne.s32.totalorder %s34, %s35
      %p46 = scmp.eq.s32.totalorder %s26, 0
      %p47 = por %p45, %p46
      %p48 = scmp.ne.s32.totalorder %s34, %s35
      %p49 = scmp.eq.s32.totalorder %s27, 2
      %p50 = por %p48, %p49
      %p52 = scmp.ne.s32.totalorder %s35, %s51
      %p53 = scmp.eq.s32.totalorder %s27, 0
      %p54 = por %p52, %p53
      %s55 = ssub.s32 %s21, %s28
      %p56 = scmp.eq.s32.totalorder %s55, 0
      %s58 = sadd.s32 %s57, 1
      %s59 = scalar_select %p56, %s57, %s58
      %p62 = pneg %p56
      %p63 = scmp.eq.s32.totalorder %s21, 2
      %p64 = por %p62, %p63
      %p65 = scmp.ne.s32.totalorder %s57, %s60
      %p66 = scmp.eq.s32.totalorder %s21, 0
      %p67 = por %p65, %p66
      %p68 = scmp.ne.s32.totalorder %s57, %s60
      %p69 = scmp.eq.s32.totalorder %s26, 2
      %p70 = por %p68, %p69
      %p71 = scmp.ne.s32.totalorder %s60, %s61
      %p72 = scmp.eq.s32.totalorder %s26, 0
      %p73 = por %p71, %p72
      %p74 = scmp.ne.s32.totalorder %s60, %s61
      %p75 = scmp.eq.s32.totalorder %s27, 2
      %p76 = por %p74, %p75
      %p78 = scmp.ne.s32.totalorder %s61, %s77
      %p79 = scmp.eq.s32.totalorder %s27, 0
      %p80 = por %p78, %p79
      %s81 = ssub.s32 %s21, %s28
      %p82 = scmp.eq.s32.totalorder %s81, 0
      %s84 = sadd.s32 %s83, 1
      %s85 = scalar_select %p82, %s83, %s84
      %p88 = pneg %p82
      %p89 = scmp.eq.s32.totalorder %s21, 2
      %p90 = por %p88, %p89
      %p91 = scmp.ne.s32.totalorder %s83, %s86
      %p92 = scmp.eq.s32.totalorder %s21, 0
      %p93 = por %p91, %p92
      %p94 = scmp.ne.s32.totalorder %s83, %s86
      %p95 = scmp.eq.s32.totalorder %s26, 2
      %p96 = por %p94, %p95
      %p97 = scmp.ne.s32.totalorder %s86, %s87
      %p98 = scmp.eq.s32.totalorder %s26, 0
      %p99 = por %p97, %p98
      %p100 = scmp.ne.s32.totalorder %s86, %s87
      %p101 = scmp.eq.s32.totalorder %s27, 2
      %p102 = por %p100, %p101
      %p104 = scmp.ne.s32.totalorder %s87, %s103
      %p105 = scmp.eq.s32.totalorder %s27, 0
      %p106 = por %p104, %p105
      %s107 = ssub.s32 %s21, %s28
      %p108 = scmp.eq.s32.totalorder %s107, 0
      %s110 = sadd.s32 %s109, 1
      %s111 = scalar_select %p108, %s109, %s110
      %p114 = pneg %p108
      %p115 = scmp.eq.s32.totalorder %s21, 2
      %p116 = por %p114, %p115
      %p117 = scmp.ne.s32.totalorder %s109, %s112
      %p118 = scmp.eq.s32.totalorder %s21, 0
      %p119 = por %p117, %p118
      %p120 = scmp.ne.s32.totalorder %s109, %s112
      %p121 = scmp.eq.s32.totalorder %s26, 2
      %p122 = por %p120, %p121
      %p123 = scmp.ne.s32.totalorder %s112, %s113
      %p124 = scmp.eq.s32.totalorder %s26, 0
      %p125 = por %p123, %p124
      %p126 = scmp.ne.s32.totalorder %s112, %s113
      %p127 = scmp.eq.s32.totalorder %s27, 2
      %p128 = por %p126, %p127
      %p130 = scmp.ne.s32.totalorder %s113, %s129
      %p131 = scmp.eq.s32.totalorder %s27, 0
      %p132 = por %p130, %p131
      %s133 = ssub.s32 %s21, %s28
      %p134 = scmp.eq.s32.totalorder %s133, 0
      %s136 = sadd.s32 %s135, 1
      %s137 = scalar_select %p134, %s135, %s136
      %p140 = pneg %p134
      %p141 = scmp.eq.s32.totalorder %s21, 2
      %p142 = por %p140, %p141
      %p143 = scmp.ne.s32.totalorder %s135, %s138
      %p144 = scmp.eq.s32.totalorder %s21, 0
      %p145 = por %p143, %p144
      %p146 = scmp.ne.s32.totalorder %s135, %s138
      %p147 = scmp.eq.s32.totalorder %s26, 2
      %p148 = por %p146, %p147
      %p149 = scmp.ne.s32.totalorder %s138, %s139
      %p150 = scmp.eq.s32.totalorder %s26, 0
      %p151 = por %p149, %p150
      %p152 = scmp.ne.s32.totalorder %s138, %s139
      %p153 = scmp.eq.s32.totalorder %s27, 2
      %p154 = por %p152, %p153
      %p156 = scmp.ne.s32.totalorder %s139, %s155
      %p157 = scmp.eq.s32.totalorder %s27, 0
      %p158 = por %p156, %p157
      %s159 = ssub.s32 %s21, %s28
      %p160 = scmp.eq.s32.totalorder %s159, 0
      %s162 = sadd.s32 %s161, 1
      %s163 = scalar_select %p160, %s161, %s162
      %p166 = pneg %p160
      %p167 = scmp.eq.s32.totalorder %s21, 2
      %p168 = por %p166, %p167
      %p169 = scmp.ne.s32.totalorder %s161, %s164
      %p170 = scmp.eq.s32.totalorder %s21, 0
      %p171 = por %p169, %p170
      %p172 = scmp.ne.s32.totalorder %s161, %s164
      %p173 = scmp.eq.s32.totalorder %s26, 2
      %p174 = por %p172, %p173
      %p175 = scmp.ne.s32.totalorder %s164, %s165
      %p176 = scmp.eq.s32.totalorder %s26, 0
      %p177 = por %p175, %p176
      %p178 = scmp.ne.s32.totalorder %s164, %s165
      %p179 = scmp.eq.s32.totalorder %s27, 2
      %p180 = por %p178, %p179
      %p182 = scmp.ne.s32.totalorder %s165, %s181
      %p183 = scmp.eq.s32.totalorder %s27, 0
      %p184 = por %p182, %p183
      %s185 = ssub.s32 %s21, %s28
      %p186 = scmp.eq.s32.totalorder %s185, 0
      %s188 = sadd.s32 %s187, 1
      %s189 = scalar_select %p186, %s187, %s188
      %p192 = pneg %p186
      %p193 = scmp.eq.s32.totalorder %s21, 2
      %p194 = por %p192, %p193
      %p195 = scmp.ne.s32.totalorder %s187, %s190
      %p196 = scmp.eq.s32.totalorder %s21, 0
      %p197 = por %p195, %p196
      %p198 = scmp.ne.s32.totalorder %s187, %s190
      %p199 = scmp.eq.s32.totalorder %s26, 2
      %p200 = por %p198, %p199
      %p201 = scmp.ne.s32.totalorder %s190, %s191
      %p202 = scmp.eq.s32.totalorder %s26, 0
      %p203 = por %p201, %p202
      %p204 = scmp.ne.s32.totalorder %s190, %s191
      %p205 = scmp.eq.s32.totalorder %s27, 2
      %p206 = por %p204, %p205
      %p208 = scmp.ne.s32.totalorder %s191, %s207
      %p209 = scmp.eq.s32.totalorder %s27, 0
      %p210 = por %p208, %p209
      %p211 = scmp.le.s32.totalorder 1, %s21
      %p212 = scmp.lt.s32.totalorder %s21, 4
      %p213 = pnand %p211, %p212
      %p214 = pneg %p213
      // Predicated region
      $region9: #{tpu_custom_call.1} parent=5 // pred_check
        _
      $region10: #{tpu_custom_call.1} parent=5 // pred_check_branch
        %216 = sbr.rel (%p213) target = $region12
      $region11: #{tpu_custom_call.1} parent=5 // pred_region
        %s217 = ssub.s32 %s21, 1
      $region12: #{tpu_custom_call.1} parent=5 // pred_fallthru
        _
      %p218 = scmp.lt.s32.totalorder %s21, 3
      // Predicated region
      $region13: #{tpu_custom_call.1} parent=5 // pred_check
        %p219 = pneg %p218
      $region14: #{tpu_custom_call.1} parent=5 // pred_check_branch
        %221 = sbr.rel (%p219) target = $region16
      $region15: #{tpu_custom_call.1} parent=5 // pred_region
        // Predicated region
        $region17: #{tpu_custom_call.1} parent=15 // pred_check
          %p222 = pneg %p41
        $region18: #{tpu_custom_call.1} parent=15 // pred_check_branch
          %224 = sbr.rel (%p222) target = $region20
        $region19: #{tpu_custom_call.1} parent=15 // pred_region
          %s225 = sand.u32 %s31, 1
          %s226 = scalar_lea.sflag [#allocation3], %s225
          %s227 = sand.u32 %s31, 1
          %s228 = smul.addr %s227, 128
          %s229 = scalar_lea.vmem [#allocation2], %s228
          %s231 = ssub.s32 2048, 2048
          %232 = vsyncadd %s226, %s231
          %s233 = smul.addr %s21, 128
          %s234 = scalar_lea.hbm %s0, %s233
          %s235 = sshll.u32 %s229, 4
          %s236 = int_to_ptr.vmem [resolvable:$true] %s235
          %241 = dma.hbm_to_vmem [thread:$0]  %s234, 2048, %s236, %s226, 384, 128, 8
        $region20: #{tpu_custom_call.1} parent=15 // pred_fallthru
          _
        // Predicated region
        $region21: #{tpu_custom_call.1} parent=15 // pred_check
          %p242 = pneg %p67
        $region22: #{tpu_custom_call.1} parent=15 // pred_check_branch
          %244 = sbr.rel (%p242) target = $region24
        $region23: #{tpu_custom_call.1} parent=15 // pred_region
          %s245 = sand.u32 %s57, 1
          %s246 = scalar_lea.sflag [#allocation6], %s245
          %s247 = sand.u32 %s57, 1
          %s248 = smul.addr %s247, 128
          %s249 = scalar_lea.vmem [#allocation5], %s248
          %s251 = ssub.s32 2048, 2048
          %252 = vsyncadd %s246, %s251
          %s253 = smul.addr %s21, 128
          %s254 = scalar_lea.hbm %s1, %s253
          %s255 = sshll.u32 %s249, 4
          %s256 = int_to_ptr.vmem [resolvable:$true] %s255
          %261 = dma.hbm_to_vmem [thread:$0]  %s254, 2048, %s256, %s246, 384, 128, 8
        $region24: #{tpu_custom_call.1} parent=15 // pred_fallthru
          _
        // Predicated region
        $region25: #{tpu_custom_call.1} parent=15 // pred_check
          %p262 = pneg %p93
        $region26: #{tpu_custom_call.1} parent=15 // pred_check_branch
          %264 = sbr.rel (%p262) target = $region28
        $region27: #{tpu_custom_call.1} parent=15 // pred_region
          %p265 = scmp.lt.s32.totalorder %s21, 2
          %s266 = scalar_select %p265, %s21, 2
          %s267 = scalar_lea.vmem %s2, %s266
        $region28: #{tpu_custom_call.1} parent=15 // pred_fallthru
          _
        // Predicated region
        $region29: #{tpu_custom_call.1} parent=15 // pred_check
          %p268 = pneg %p119
        $region30: #{tpu_custom_call.1} parent=15 // pred_check_branch
          %270 = sbr.rel (%p268) target = $region32
        $region31: #{tpu_custom_call.1} parent=15 // pred_region
          %p271 = scmp.lt.s32.totalorder %s21, 2
          %s272 = scalar_select %p271, %s21, 2
          %s273 = scalar_lea.vmem %s3, %s272
        $region32: #{tpu_custom_call.1} parent=15 // pred_fallthru
          _
        // Predicated region
        $region33: #{tpu_custom_call.1} parent=15 // pred_check
          %p274 = pneg %p145
        $region34: #{tpu_custom_call.1} parent=15 // pred_check_branch
          %276 = sbr.rel (%p274) target = $region36
        $region35: #{tpu_custom_call.1} parent=15 // pred_region
          %p277 = scmp.lt.s32.totalorder %s21, 2
          %s278 = scalar_select %p277, %s21, 2
          %s279 = scalar_lea.vmem %s4, %s278
        $region36: #{tpu_custom_call.1} parent=15 // pred_fallthru
          _
        // Predicated region
        $region37: #{tpu_custom_call.1} parent=15 // pred_check
          %p280 = pneg %p171
        $region38: #{tpu_custom_call.1} parent=15 // pred_check_branch
          %282 = sbr.rel (%p280) target = $region40
        $region39: #{tpu_custom_call.1} parent=15 // pred_region
          %p283 = scmp.lt.s32.totalorder %s21, 2
          %s284 = scalar_select %p283, %s21, 2
          %s285 = scalar_lea.vmem %s5, %s284
        $region40: #{tpu_custom_call.1} parent=15 // pred_fallthru
          _
      $region16: #{tpu_custom_call.1} parent=5 // pred_fallthru
        _
      %p286 = scmp.le.s32.totalorder 1, %s21
      %p287 = scmp.lt.s32.totalorder %s21, 4
      %p288 = pnand %p286, %p287
      %p289 = pneg %p288
      // Predicated region
      $region41: #{tpu_custom_call.1} parent=5 // pred_check
        _
      $region42: #{tpu_custom_call.1} parent=5 // pred_check_branch
        %291 = sbr.rel (%p288) target = $region44
      $region43: #{tpu_custom_call.1} parent=5 // pred_region
        %s292 = ssub.s32 %s21, 1
        %s293 = sand.u32 %s34, 1
        %s294 = scalar_lea.sflag [#allocation3], %s293
        %s295 = sand.u32 %s34, 1
        %s296 = smul.addr %s295, 128
        %s297 = scalar_lea.vmem [#allocation2], %s296
        // Predicated region
        $region45: #{tpu_custom_call.1} parent=43 // pred_check
          %p298 = pneg %p47
        $region46: #{tpu_custom_call.1} parent=43 // pred_check_branch
          %300 = sbr.rel (%p298) target = $region48
        $region47: #{tpu_custom_call.1} parent=43 // pred_region
          %301 = dma.done %s294, 2048
        $region48: #{tpu_custom_call.1} parent=43 // pred_fallthru
          _
        %s302 = sand.u32 %s60, 1
        %s303 = scalar_lea.sflag [#allocation6], %s302
        %s304 = sand.u32 %s60, 1
        %s305 = smul.addr %s304, 128
        %s306 = scalar_lea.vmem [#allocation5], %s305
        // Predicated region
        $region49: #{tpu_custom_call.1} parent=43 // pred_check
          %p307 = pneg %p73
        $region50: #{tpu_custom_call.1} parent=43 // pred_check_branch
          %309 = sbr.rel (%p307) target = $region52
        $region51: #{tpu_custom_call.1} parent=43 // pred_region
          %310 = dma.done %s303, 2048
        $region52: #{tpu_custom_call.1} parent=43 // pred_fallthru
          _
        %s311 = sand.u32 %s34, 1
        %s312 = scalar_lea.sflag [#allocation3], %s311
        %s313 = sand.u32 %s34, 1
        %s314 = smul.addr %s313, 128
        %s315 = scalar_lea.vmem [#allocation2], %s314
        %p316 = pneg %p47
        %p317 = pneg %p44
        %s318 = sand.u32 %s60, 1
        %s319 = scalar_lea.sflag [#allocation6], %s318
        %s320 = sand.u32 %s60, 1
        %s321 = smul.addr %s320, 128
        %s322 = scalar_lea.vmem [#allocation5], %s321
        %p323 = pneg %p73
        %p324 = pneg %p70
        %p325 = scmp.lt.s32.totalorder %s26, 2
        %s326 = scalar_select %p325, %s26, 2
        %s327 = scalar_lea.vmem %s2, %s326
        %p328 = pneg %p99
        %p329 = pneg %p96
        %p330 = scmp.lt.s32.totalorder %s26, 2
        %s331 = scalar_select %p330, %s26, 2
        %s332 = scalar_lea.vmem %s3, %s331
        %p333 = pneg %p125
        %p334 = pneg %p122
        %p335 = scmp.lt.s32.totalorder %s26, 2
        %s336 = scalar_select %p335, %s26, 2
        %s337 = scalar_lea.vmem %s4, %s336
        %p338 = pneg %p151
        %p339 = pneg %p148
        %p340 = scmp.lt.s32.totalorder %s26, 2
        %s341 = scalar_select %p340, %s26, 2
        %s342 = scalar_lea.vmem %s5, %s341
        %p343 = pneg %p177
        %p344 = pneg %p174
        %p345 = pneg %p203
        %p346 = pneg %p200
        %s347 = sand.u32 %s190, 1
        %s348 = scalar_lea.sflag [#allocation4], %s347
        %s349 = sand.u32 %s190, 1
        %s350 = scalar_lea.vmem [#allocation7], %s349
        %p351 = scmp.lt.s32.totalorder %s26, 2
        %s352 = scalar_select %p351, %s26, 2
        %s353 = scalar_lea.vmem %s2, %s352
        %p354 = scmp.lt.s32.totalorder %s26, 2
        %s355 = scalar_select %p354, %s26, 2
        %s356 = scalar_lea.vmem %s3, %s355
        %p357 = scmp.lt.s32.totalorder %s26, 2
        %s358 = scalar_select %p357, %s26, 2
        %s359 = scalar_lea.vmem %s4, %s358
        %p360 = scmp.lt.s32.totalorder %s26, 2
        %s361 = scalar_select %p360, %s26, 2
        %s362 = scalar_lea.vmem %s5, %s361
        %v363 = vld [vmem:[%s297] sm:$0xff]
        %v364 = vld [vmem:[%s297 + $0x8] sm:$0xff]
        %v365 = vld [vmem:[%s297 + $0x10] sm:$0xff]
        %v366 = vld [vmem:[%s297 + $0x18] sm:$0xff]
        %v367 = vld [vmem:[%s297 + $0x20] sm:$0xff]
        %v368 = vld [vmem:[%s297 + $0x28] sm:$0xff]
        %v369 = vld [vmem:[%s297 + $0x30] sm:$0xff]
        %v370 = vld [vmem:[%s297 + $0x38] sm:$0xff]
        %v371 = vld [vmem:[%s297 + $0x40] sm:$0xff]
        %v372 = vld [vmem:[%s297 + $0x48] sm:$0xff]
        %v373 = vld [vmem:[%s297 + $0x50] sm:$0xff]
        %v374 = vld [vmem:[%s297 + $0x58] sm:$0xff]
        %v375 = vld [vmem:[%s297 + $0x60] sm:$0xff]
        %v376 = vld [vmem:[%s297 + $0x68] sm:$0xff]
        %v377 = vld [vmem:[%s297 + $0x70] sm:$0xff]
        %v378 = vld [vmem:[%s297 + $0x78] sm:$0xff]
        %v379 = vld [vmem:[%s306] sm:$0xff]
        %v380 = vld [vmem:[%s306 + $0x8] sm:$0xff]
        %v381 = vld [vmem:[%s306 + $0x10] sm:$0xff]
        %v382 = vld [vmem:[%s306 + $0x18] sm:$0xff]
        %v383 = vld [vmem:[%s306 + $0x20] sm:$0xff]
        %v384 = vld [vmem:[%s306 + $0x28] sm:$0xff]
        %v385 = vld [vmem:[%s306 + $0x30] sm:$0xff]
        %v386 = vld [vmem:[%s306 + $0x38] sm:$0xff]
        %v387 = vld [vmem:[%s306 + $0x40] sm:$0xff]
        %v388 = vld [vmem:[%s306 + $0x48] sm:$0xff]
        %v389 = vld [vmem:[%s306 + $0x50] sm:$0xff]
        %v390 = vld [vmem:[%s306 + $0x58] sm:$0xff]
        %v391 = vld [vmem:[%s306 + $0x60] sm:$0xff]
        %v392 = vld [vmem:[%s306 + $0x68] sm:$0xff]
        %v393 = vld [vmem:[%s306 + $0x70] sm:$0xff]
        %v394 = vld [vmem:[%s306 + $0x78] sm:$0xff]
        %v395 = vmul.f32 %v363, %v379
        %v396 = vmul.f32 %v364, %v380
        %v397 = vmul.f32 %v365, %v381
        %v398 = vmul.f32 %v366, %v382
        %v399 = vmul.f32 %v367, %v383
        %v400 = vmul.f32 %v368, %v384
        %v401 = vmul.f32 %v369, %v385
        %v402 = vmul.f32 %v370, %v386
        %v403 = vmul.f32 %v371, %v387
        %v404 = vmul.f32 %v372, %v388
        %v405 = vmul.f32 %v373, %v389
        %v406 = vmul.f32 %v374, %v390
        %v407 = vmul.f32 %v375, %v391
        %v408 = vmul.f32 %v376, %v392
        %v409 = vmul.f32 %v377, %v393
        %v410 = vmul.f32 %v378, %v394
        %v411 = vadd.f32 %v395, %v396
        %v412 = vadd.f32 %v411, %v397
        %v413 = vadd.f32 %v412, %v398
        %v414 = vadd.f32 %v413, %v399
        %v415 = vadd.f32 %v414, %v400
        %v416 = vadd.f32 %v415, %v401
        %v417 = vadd.f32 %v416, %v402
        %v418 = vadd.f32 %v417, %v403
        %v419 = vadd.f32 %v418, %v404
        %v420 = vadd.f32 %v419, %v405
        %v421 = vadd.f32 %v420, %v406
        %v422 = vadd.f32 %v421, %v407
        %v423 = vadd.f32 %v422, %v408
        %v424 = vadd.f32 %v423, %v409
        %v425 = vadd.f32 %v424, %v410
        %v426 = vrot.slane %v425, 4
        %v427 = vadd.f32 %v425, %v426
        %v428 = vrot.slane %v427, 2
        %v429 = vadd.f32 %v427, %v428
        %v430 = vrot.slane %v429, 1
        %v431 = vadd.f32 %v429, %v430
        %v432 = vld [vmem:[%s353] sm:$0x1]
        %v433 = vadd.f32 %v431, %v432
        %v434 = vld [vmem:[%s356] sm:$0x1]
        %v435 = vadd.f32 %v433, %v434
        %v436 = vld [vmem:[%s359] sm:$0x1]
        %v437 = vlog2.pop %v436
        %v438 = vmul.f32 %v437, 0.6931472
        %v439 = vsub.f32 %v435, %v438
        %v440 = vld [vmem:[%s362] sm:$0x1]
        %v441 = vmul.f32 %v440, %v439
        %v442 = vmul.f32 %v441, %v439
        %443 = vst [vmem:[%s350] sm:$0x1] %v442
        %s444 = sand.u32 %s190, 1
        %s445 = scalar_lea.sflag [#allocation4], %s444
        %s446 = sand.u32 %s190, 1
        %s447 = scalar_lea.vmem [#allocation7], %s446
        // Predicated region
        $region53: #{tpu_custom_call.1} parent=43 // pred_check
          %p448 = pneg %p200
        $region54: #{tpu_custom_call.1} parent=43 // pred_check_branch
          %450 = sbr.rel (%p448) target = $region56
        $region55: #{tpu_custom_call.1} parent=43 // pred_region
          %s452 = ssub.s32 16, 16
          %453 = vsyncadd %s445, %s452
          %s454 = smul.addr %s26, 16
          %s455 = scalar_lea.hbm %s6, %s454
          %s457 = sshll.u32 %s447, 4
          %s458 = int_to_ptr.vmem [resolvable:$true] %s457
          %460 = dma.vmem_to_hbm [thread:$0]  %s458, 16, %s455, %s445
        $region56: #{tpu_custom_call.1} parent=43 // pred_fallthru
          _
      $region44: #{tpu_custom_call.1} parent=5 // pred_fallthru
        _
      %p461 = scmp.le.s32.totalorder 2, %s21
      // Predicated region
      $region57: #{tpu_custom_call.1} parent=5 // pred_check
        %p462 = pneg %p461
      $region58: #{tpu_custom_call.1} parent=5 // pred_check_branch
        %464 = sbr.rel (%p462) target = $region60
      $region59: #{tpu_custom_call.1} parent=5 // pred_region
        %s465 = ssub.s32 %s21, 2
        // Predicated region
        $region61: #{tpu_custom_call.1} parent=59 // pred_check
          %p466 = pneg %p206
        $region62: #{tpu_custom_call.1} parent=59 // pred_check_branch
          %468 = sbr.rel (%p466) target = $region64
        $region63: #{tpu_custom_call.1} parent=59 // pred_region
          %s469 = sand.u32 %s191, 1
          %s470 = scalar_lea.sflag [#allocation4], %s469
          %s471 = sand.u32 %s191, 1
          %s472 = scalar_lea.vmem [#allocation7], %s471
          %473 = dma.done %s470, 16
        $region64: #{tpu_custom_call.1} parent=59 // pred_fallthru
          _
      $region60: #{tpu_custom_call.1} parent=5 // pred_fallthru
        _
    $region6: #{tpu_custom_call.1} parent=1 // loop_footer
      %s25 = sadd.s32 1, %s21
    $region7: #{tpu_custom_call.1} parent=1 // loop_footer_branch
      %20 = sbr.rel target = $region3
    $region8: #{tpu_custom_call.1} parent=1 // loop_exit
      _
    %474 = vsyncpa [#allocation3], 1
    %s475 = scalar_lea.sflag [#allocation3], 1
    %476 = vsyncpa %s475, 1
    %477 = vsyncpa [#allocation6], 1
    %s478 = scalar_lea.sflag [#allocation6], 1
    %479 = vsyncpa %s478, 1
    %480 = vsyncpa [#allocation4], 1
    %s481 = scalar_lea.sflag [#allocation4], 1
    %482 = vsyncpa %s481, 1

</llo_original>
